<compile_context>
chip_gen: v6e
topology: v6e:2x2x1
jax: 0.10.0
libtpu: 0.0.40
codegen_flags: <defaults>
</compile_context>

<pallas_src>
import functools

import jax
import jax.numpy as jnp
from jax.experimental import pallas as pl
from jax.experimental.pallas import tpu as pltpu


def _round_up(x, m):
    return ((x + m - 1) // m) * m


def _mlp_kernel(x_ref, w1_ref, b1_ref, w2_ref, b2_ref, w3_ref, b3_ref, o_ref,
                *, compute_dtype):
    """Fused 3-layer MLP forward for one batch tile (weights resident in VMEM).

    Dots run in `compute_dtype` (bf16 by default for full MXU rate on v6e/v7x)
    with f32 accumulation; bias-add / ReLU stay f32.
    """
    cd = compute_dtype
    x = x_ref[...].astype(cd)                                   # (TB, D_in)
    h = jnp.dot(x, w1_ref[...].astype(cd),
                preferred_element_type=jnp.float32)
    h = jnp.maximum(h + b1_ref[...], 0.0)                       # ReLU (f32)
    h = jnp.dot(h.astype(cd), w2_ref[...].astype(cd),
                preferred_element_type=jnp.float32)
    h = jnp.maximum(h + b2_ref[...], 0.0)                       # ReLU (f32)
    out = jnp.dot(h.astype(cd), w3_ref[...].astype(cd),
                  preferred_element_type=jnp.float32) + b3_ref[...]
    o_ref[...] = out.astype(o_ref.dtype)                        # (TB, D_out)


def _pick_tile_b(n, max_tile_b):
    """Batch tile: multiple of 8 (sublane rule), at least 2 grid steps when the
    batch allows (so both v7x TensorCores get work), capped by max_tile_b."""
    max_tile_b = max(8, (int(max_tile_b) // 8) * 8)   # enforce sublane multiple
    if n <= 8:
        return n                                      # full-dim block, 1 step
    half = _round_up(pl.cdiv(n, 2), 8)                # >= 2 parallel steps
    return min(max_tile_b, half)


@functools.partial(
    jax.jit,
    static_argnames=("tile_b", "compute_dtype", "single_buffer_weights"))
def _forward_impl(x, w1, b1, w2, b2, w3, b3, *, tile_b, compute_dtype,
                  single_buffer_weights):
    n, d_in = x.shape
    h1 = w1.shape[1]
    h2 = w2.shape[1]
    d_out = w3.shape[1]

    # Weights carried in compute dtype (halves weight HBM/VMEM bytes for bf16);
    # biases stay f32 for the f32 bias-add.
    w1c = w1.astype(compute_dtype)
    w2c = w2.astype(compute_dtype)
    w3c = w3.astype(compute_dtype)

    grid = (pl.cdiv(n, tile_b),)

    # Resident operands: same (only) block every grid step -> DMA'd once.
    # Buffered(1) drops the pointless second pipeline buffer when supported.
    def resident(shape):
        if single_buffer_weights:
            return pl.BlockSpec(shape, lambda i: (0, 0),
                                pipeline_mode=pl.Buffered(1))
        return pl.BlockSpec(shape, lambda i: (0, 0))

    cd_bytes = jnp.dtype(compute_dtype).itemsize
    x_bytes = x.dtype.itemsize
    w_elems = d_in * h1 + h1 * h2 + h2 * d_out
    b_elems = h1 + h2 + d_out

    flops = 2 * n * (d_in * h1 + h1 * h2 + h2 * d_out)
    bytes_accessed = (n * d_in * x_bytes          # x stream in (unpadded)
                      + w_elems * cd_bytes        # resident weights (once)
                      + b_elems * 4               # resident biases (once)
                      + n * d_out * 4)            # out stream (unpadded)

    # VMEM budget: double-buffered x/out streams, single/double-buffered
    # resident weights, f32 activation intermediates, plus generous headroom.
    wbuf = 1 if single_buffer_weights else 2
    vmem_needed = (2 * tile_b * d_in * x_bytes
                   + 2 * tile_b * d_out * 4
                   + wbuf * (w_elems * cd_bytes + b_elems * 4)
                   + 4 * tile_b * (h1 + h2) * 4)
    vmem_limit = int(min(48 * 2**20, max(32 * 2**20, 4 * vmem_needed)))

    return pl.pallas_call(
        functools.partial(_mlp_kernel, compute_dtype=compute_dtype),
        out_shape=jax.ShapeDtypeStruct((n, d_out), x.dtype),
        grid_spec=pl.GridSpec(
            grid=grid,
            in_specs=[
                pl.BlockSpec((tile_b, d_in), lambda i: (i, 0)),   # x batch tile
                resident((d_in, h1)), resident((1, h1)),          # W1, b1
                resident((h1, h2)), resident((1, h2)),            # W2, b2
                resident((h2, d_out)), resident((1, d_out)),      # W3, b3
            ],
            out_specs=pl.BlockSpec((tile_b, d_out), lambda i: (i, 0)),
        ),
        compiler_params=pltpu.CompilerParams(
            dimension_semantics=("parallel",),
            vmem_limit_bytes=vmem_limit,
        ),
        cost_estimate=pl.CostEstimate(
            flops=flops, transcendentals=0, bytes_accessed=bytes_accessed),
    )(x, w1c, b1, w2c, b2, w3c, b3)


# Lazily detected: does this JAX/Mosaic accept pipeline_mode=pl.Buffered(1)?
_BUFFERED_WEIGHTS_OK = None


def sequential_forward(x, w1, b1, w2, b2, w3, b3, *,
                       compute_dtype=jnp.bfloat16, max_tile_b=1024):
    """y = relu(relu(x @ W1 + b1) @ W2 + b2) @ W3 + b3  (Sequential.forward)."""
    global _BUFFERED_WEIGHTS_OK
    tile_b = _pick_tile_b(x.shape[0], max_tile_b)
    kwargs = dict(tile_b=tile_b, compute_dtype=compute_dtype)
    if _BUFFERED_WEIGHTS_OK is None:
        try:
            out = _forward_impl(x, w1, b1, w2, b2, w3, b3,
                                single_buffer_weights=True, **kwargs)
            out = jax.block_until_ready(out)
            _BUFFERED_WEIGHTS_OK = True
            return out
        except Exception:
            # Lowering rejected Buffered(1); use default double buffering.
            _BUFFERED_WEIGHTS_OK = False
    return _forward_impl(x, w1, b1, w2, b2, w3, b3,
                         single_buffer_weights=_BUFFERED_WEIGHTS_OK, **kwargs)


def _init_linear(key, fan_in, fan_out, gain):
    """Deterministic Xavier-style init, mirroring Sequential.__init__'s gain
    assignment (sqrt(2) before ReLU, 1.0 for the final Linear)."""
    kw, kb = jax.random.split(key)
    std = gain * jnp.sqrt(2.0 / (fan_in + fan_out))
    w = std * jax.random.normal(kw, (fan_in, fan_out), dtype=jnp.float32)
    b = std * jax.random.normal(kb, (1, fan_out), dtype=jnp.float32)
    return w, b


def _reference(x, w1, b1, w2, b2, w3, b3):
    h1 = jnp.maximum(x @ w1 + b1, 0.0)
    h2 = jnp.maximum(h1 @ w2 + b2, 0.0)
    return h2 @ w3 + b3


if __name__ == "__main__":
    # TODO(synk): Sequential.grad()/backward() (manual training loop) are not
    # part of the forward pass and are not implemented here.
    key = jax.random.PRNGKey(0)
    k_x, k1, k2, k3, k_x2 = jax.random.split(key, 5)

    batch, d_in, hidden, d_out = 16, 10, 50, 1

    x = jax.random.normal(k_x, (batch, d_in), dtype=jnp.float32)
    # Gains exactly as Sequential.__init__: sqrt(2) before ReLU, 1.0 for last.
    w1, b1 = _init_linear(k1, d_in, hidden, gain=jnp.sqrt(2.0))
    w2, b2 = _init_linear(k2, hidden, hidden, gain=jnp.sqrt(2.0))
    w3, b3 = _init_linear(k3, hidden, d_out, gain=1.0)

    ref = _reference(x, w1, b1, w2, b2, w3, b3)

    # f32 compute path: bit-tight check against the reference.
    out_f32 = sequential_forward(x, w1, b1, w2, b2, w3, b3,
                                 compute_dtype=jnp.float32)
    out_f32 = jax.block_until_ready(out_f32)
    assert out_f32.shape == (batch, d_out)
    assert jnp.allclose(out_f32, ref, atol=2e-5, rtol=1e-5), "f32 mismatch"

    # bf16 MXU path (the v6e/v7x default): f32 accumulation, looser tolerance.
    out_bf16 = sequential_forward(x, w1, b1, w2, b2, w3, b3)
    out_bf16 = jax.block_until_ready(out_bf16)
    assert out_bf16.shape == (batch, d_out)
    assert jnp.allclose(out_bf16, ref, atol=5e-2, rtol=5e-2), "bf16 mismatch"

    # Multi-step grid with a partial trailing batch tile (no wrapper pad/slice).
    batch2 = 300
    x2 = jax.random.normal(k_x2, (batch2, d_in), dtype=jnp.float32)
    ref2 = _reference(x2, w1, b1, w2, b2, w3, b3)
    out2 = sequential_forward(x2, w1, b1, w2, b2, w3, b3,
                              compute_dtype=jnp.float32, max_tile_b=128)
    out2 = jax.block_until_ready(out2)
    assert out2.shape == (batch2, d_out)
    assert jnp.allclose(out2, ref2, atol=2e-5, rtol=1e-5), "tiled mismatch"

    print("KERNEL_OK")
</pallas_src>

<mosaic_0001>
module attributes {stable_mosaic.version = 11 : i64} {
  func.func @_mlp_kernel(%arg0: i32, %arg1: memref<8x10xf32, #tpu.memory_space<vmem>>, %arg2: memref<10x50xf32, #tpu.memory_space<vmem>>, %arg3: memref<1x50xf32, #tpu.memory_space<vmem>>, %arg4: memref<50x50xf32, #tpu.memory_space<vmem>>, %arg5: memref<1x50xf32, #tpu.memory_space<vmem>>, %arg6: memref<50x1xf32, #tpu.memory_space<vmem>>, %arg7: memref<1x1xf32, #tpu.memory_space<vmem>>, %arg8: memref<8x1xf32, #tpu.memory_space<vmem>>) attributes {dimension_semantics = [#tpu.dimension_semantics<parallel>], iteration_bounds = array<i64: 2>, scalar_prefetch = 0 : i64, scratch_operands = 0 : i64, tpu.core_type = #tpu.core_type<tc>, window_params = [{transform_indices = @transform_0, window_bounds = array<i64: 8, 10>}, {pipeline_mode = #tpu.pipeline_mode<synchronous>, transform_indices = @transform_1, window_bounds = array<i64: 10, 50>}, {pipeline_mode = #tpu.pipeline_mode<synchronous>, transform_indices = @transform_2, window_bounds = array<i64: 1, 50>}, {pipeline_mode = #tpu.pipeline_mode<synchronous>, transform_indices = @transform_3, window_bounds = array<i64: 50, 50>}, {pipeline_mode = #tpu.pipeline_mode<synchronous>, transform_indices = @transform_4, window_bounds = array<i64: 1, 50>}, {pipeline_mode = #tpu.pipeline_mode<synchronous>, transform_indices = @transform_5, window_bounds = array<i64: 50, 1>}, {pipeline_mode = #tpu.pipeline_mode<synchronous>, transform_indices = @transform_6, window_bounds = array<i64: 1, 1>}, {transform_indices = @transform_7, window_bounds = array<i64: 8, 1>}]} {
    %c0 = arith.constant 0 : index
    %c0_0 = arith.constant 0 : index
    %0 = vector.load %arg1[%c0, %c0_0] : memref<8x10xf32, #tpu.memory_space<vmem>>, vector<8x10xf32>
    %c0_1 = arith.constant 0 : index
    %c0_2 = arith.constant 0 : index
    %1 = vector.load %arg2[%c0_1, %c0_2] : memref<10x50xf32, #tpu.memory_space<vmem>>, vector<10x50xf32>
    %cst = arith.constant dense<0.000000e+00> : vector<8x50xf32>
    %2 = tpu.matmul %0, %1, %cst {dimension_numbers = #tpu.dot_dimension_numbers<[1], [0], [0], [1], [0, 0, 1, 1], [], []>} : vector<8x10xf32>, vector<10x50xf32>, vector<8x50xf32> -> vector<8x50xf32>
    %c0_3 = arith.constant 0 : index
    %c0_4 = arith.constant 0 : index
    %3 = vector.load %arg3[%c0_3, %c0_4] : memref<1x50xf32, #tpu.memory_space<vmem>>, vector<1x50xf32>
    %4 = vector.broadcast %3 : vector<1x50xf32> to vector<8x50xf32>
    %5 = arith.addf %2, %4 : vector<8x50xf32>
    %cst_5 = arith.constant 0.000000e+00 : f32
    %6 = vector.broadcast %cst_5 : f32 to vector<8x50xf32>
    %7 = arith.maximumf %5, %6 : vector<8x50xf32>
    %c0_6 = arith.constant 0 : index
    %c0_7 = arith.constant 0 : index
    %8 = vector.load %arg4[%c0_6, %c0_7] : memref<50x50xf32, #tpu.memory_space<vmem>>, vector<50x50xf32>
    %cst_8 = arith.constant dense<0.000000e+00> : vector<8x50xf32>
    %9 = tpu.matmul %7, %8, %cst_8 {dimension_numbers = #tpu.dot_dimension_numbers<[1], [0], [0], [1], [0, 0, 1, 1], [], []>} : vector<8x50xf32>, vector<50x50xf32>, vector<8x50xf32> -> vector<8x50xf32>
    %c0_9 = arith.constant 0 : index
    %c0_10 = arith.constant 0 : index
    %10 = vector.load %arg5[%c0_9, %c0_10] : memref<1x50xf32, #tpu.memory_space<vmem>>, vector<1x50xf32>
    %11 = vector.broadcast %10 : vector<1x50xf32> to vector<8x50xf32>
    %12 = arith.addf %9, %11 : vector<8x50xf32>
    %cst_11 = arith.constant 0.000000e+00 : f32
    %13 = vector.broadcast %cst_11 : f32 to vector<8x50xf32>
    %14 = arith.maximumf %12, %13 : vector<8x50xf32>
    %c0_12 = arith.constant 0 : index
    %c0_13 = arith.constant 0 : index
    %15 = vector.load %arg6[%c0_12, %c0_13] : memref<50x1xf32, #tpu.memory_space<vmem>>, vector<50x1xf32>
    %cst_14 = arith.constant dense<0.000000e+00> : vector<8x1xf32>
    %16 = tpu.matmul %14, %15, %cst_14 {dimension_numbers = #tpu.dot_dimension_numbers<[1], [0], [0], [1], [0, 0, 1, 1], [], []>} : vector<8x50xf32>, vector<50x1xf32>, vector<8x1xf32> -> vector<8x1xf32>
    %c0_15 = arith.constant 0 : index
    %c0_16 = arith.constant 0 : index
    %17 = vector.load %arg7[%c0_15, %c0_16] : memref<1x1xf32, #tpu.memory_space<vmem>>, vector<1x1xf32>
    %18 = vector.broadcast %17 : vector<1x1xf32> to vector<8x1xf32>
    %19 = arith.addf %16, %18 : vector<8x1xf32>
    %c0_17 = arith.constant 0 : index
    %c0_18 = arith.constant 0 : index
    %20 = vector.load %arg8[%c0_17, %c0_18] : memref<8x1xf32, #tpu.memory_space<vmem>>, vector<8x1xf32>
    tpu.vector_store %arg8[%c0_17, %c0_18], %19 {strides = array<i32>} : memref<8x1xf32, #tpu.memory_space<vmem>>, vector<8x1xf32>,
    return
  }
  func.func @transform_0(%arg0: i32) -> (i32, i32) {
    %c0_i32 = arith.constant 0 : i32
    %c0_i32_0 = arith.constant 0 : i32
    return %arg0, %c0_i32 : i32, i32
  }
  func.func @transform_1(%arg0: i32) -> (i32, i32) {
    %c0_i32 = arith.constant 0 : i32
    %c0_i32_0 = arith.constant 0 : i32
    %c0_i32_1 = arith.constant 0 : i32
    return %c0_i32, %c0_i32_0 : i32, i32
  }
  func.func @transform_2(%arg0: i32) -> (i32, i32) {
    %c0_i32 = arith.constant 0 : i32
    %c0_i32_0 = arith.constant 0 : i32
    %c0_i32_1 = arith.constant 0 : i32
    return %c0_i32, %c0_i32_0 : i32, i32
  }
  func.func @transform_3(%arg0: i32) -> (i32, i32) {
    %c0_i32 = arith.constant 0 : i32
    %c0_i32_0 = arith.constant 0 : i32
    %c0_i32_1 = arith.constant 0 : i32
    return %c0_i32, %c0_i32_0 : i32, i32
  }
  func.func @transform_4(%arg0: i32) -> (i32, i32) {
    %c0_i32 = arith.constant 0 : i32
    %c0_i32_0 = arith.constant 0 : i32
    %c0_i32_1 = arith.constant 0 : i32
    return %c0_i32, %c0_i32_0 : i32, i32
  }
  func.func @transform_5(%arg0: i32) -> (i32, i32) {
    %c0_i32 = arith.constant 0 : i32
    %c0_i32_0 = arith.constant 0 : i32
    %c0_i32_1 = arith.constant 0 : i32
    return %c0_i32, %c0_i32_0 : i32, i32
  }
  func.func @transform_6(%arg0: i32) -> (i32, i32) {
    %c0_i32 = arith.constant 0 : i32
    %c0_i32_0 = arith.constant 0 : i32
    %c0_i32_1 = arith.constant 0 : i32
    return %c0_i32, %c0_i32_0 : i32, i32
  }
  func.func @transform_7(%arg0: i32) -> (i32, i32) {
    %c0_i32 = arith.constant 0 : i32
    %c0_i32_0 = arith.constant 0 : i32
    return %arg0, %c0_i32 : i32, i32
  }
}

module attributes {stable_mosaic.version = 11 : i64} {
  func.func @_mlp_kernel(%arg0: i32, %arg1: memref<8x10xf32, #tpu.memory_space<vmem>>, %arg2: memref<10x50xf32, #tpu.memory_space<vmem>>, %arg3: memref<1x50xf32, #tpu.memory_space<vmem>>, %arg4: memref<50x50xf32, #tpu.memory_space<vmem>>, %arg5: memref<1x50xf32, #tpu.memory_space<vmem>>, %arg6: memref<50x1xf32, #tpu.memory_space<vmem>>, %arg7: memref<1x1xf32, #tpu.memory_space<vmem>>, %arg8: memref<8x1xf32, #tpu.memory_space<vmem>>) attributes {dimension_semantics = [#tpu.dimension_semantics<parallel>], iteration_bounds = array<i64: 2>, scalar_prefetch = 0 : i64, scratch_operands = 0 : i64, tpu.core_type = #tpu.core_type<tc>, window_params = [{transform_indices = @transform_0, window_bounds = array<i64: 8, 10>}, {pipeline_mode = #tpu.pipeline_mode<synchronous>, transform_indices = @transform_1, window_bounds = array<i64: 10, 50>}, {pipeline_mode = #tpu.pipeline_mode<synchronous>, transform_indices = @transform_2, window_bounds = array<i64: 1, 50>}, {pipeline_mode = #tpu.pipeline_mode<synchronous>, transform_indices = @transform_3, window_bounds = array<i64: 50, 50>}, {pipeline_mode = #tpu.pipeline_mode<synchronous>, transform_indices = @transform_4, window_bounds = array<i64: 1, 50>}, {pipeline_mode = #tpu.pipeline_mode<synchronous>, transform_indices = @transform_5, window_bounds = array<i64: 50, 1>}, {pipeline_mode = #tpu.pipeline_mode<synchronous>, transform_indices = @transform_6, window_bounds = array<i64: 1, 1>}, {transform_indices = @transform_7, window_bounds = array<i64: 8, 1>}]} {
    %c0 = arith.constant 0 : index
    %c0_0 = arith.constant 0 : index
    %0 = vector.load %arg1[%c0, %c0_0] : memref<8x10xf32, #tpu.memory_space<vmem>>, vector<8x10xf32>
    %c0_1 = arith.constant 0 : index
    %c0_2 = arith.constant 0 : index
    %1 = vector.load %arg2[%c0_1, %c0_2] : memref<10x50xf32, #tpu.memory_space<vmem>>, vector<10x50xf32>
    %cst = arith.constant dense<0.000000e+00> : vector<8x50xf32>
    %2 = tpu.matmul %0, %1, %cst {dimension_numbers = #tpu.dot_dimension_numbers<[1], [0], [0], [1], [0, 0, 1, 1], [], []>} : vector<8x10xf32>, vector<10x50xf32>, vector<8x50xf32> -> vector<8x50xf32>
    %c0_3 = arith.constant 0 : index
    %c0_4 = arith.constant 0 : index
    %3 = vector.load %arg3[%c0_3, %c0_4] : memref<1x50xf32, #tpu.memory_space<vmem>>, vector<1x50xf32>
    %4 = vector.broadcast %3 : vector<1x50xf32> to vector<8x50xf32>
    %5 = arith.addf %2, %4 : vector<8x50xf32>
    %cst_5 = arith.constant 0.000000e+00 : f32
    %6 = vector.broadcast %cst_5 : f32 to vector<8x50xf32>
    %7 = arith.maximumf %5, %6 : vector<8x50xf32>
    %c0_6 = arith.constant 0 : index
    %c0_7 = arith.constant 0 : index
    %8 = vector.load %arg4[%c0_6, %c0_7] : memref<50x50xf32, #tpu.memory_space<vmem>>, vector<50x50xf32>
    %cst_8 = arith.constant dense<0.000000e+00> : vector<8x50xf32>
    %9 = tpu.matmul %7, %8, %cst_8 {dimension_numbers = #tpu.dot_dimension_numbers<[1], [0], [0], [1], [0, 0, 1, 1], [], []>} : vector<8x50xf32>, vector<50x50xf32>, vector<8x50xf32> -> vector<8x50xf32>
    %c0_9 = arith.constant 0 : index
    %c0_10 = arith.constant 0 : index
    %10 = vector.load %arg5[%c0_9, %c0_10] : memref<1x50xf32, #tpu.memory_space<vmem>>, vector<1x50xf32>
    %11 = vector.broadcast %10 : vector<1x50xf32> to vector<8x50xf32>
    %12 = arith.addf %9, %11 : vector<8x50xf32>
    %cst_11 = arith.constant 0.000000e+00 : f32
    %13 = vector.broadcast %cst_11 : f32 to vector<8x50xf32>
    %14 = arith.maximumf %12, %13 : vector<8x50xf32>
    %c0_12 = arith.constant 0 : index
    %c0_13 = arith.constant 0 : index
    %15 = vector.load %arg6[%c0_12, %c0_13] : memref<50x1xf32, #tpu.memory_space<vmem>>, vector<50x1xf32>
    %cst_14 = arith.constant dense<0.000000e+00> : vector<8x1xf32>
    %16 = tpu.matmul %14, %15, %cst_14 {dimension_numbers = #tpu.dot_dimension_numbers<[1], [0], [0], [1], [0, 0, 1, 1], [], []>} : vector<8x50xf32>, vector<50x1xf32>, vector<8x1xf32> -> vector<8x1xf32>
    %c0_15 = arith.constant 0 : index
    %c0_16 = arith.constant 0 : index
    %17 = vector.load %arg7[%c0_15, %c0_16] : memref<1x1xf32, #tpu.memory_space<vmem>>, vector<1x1xf32>
    %18 = vector.broadcast %17 : vector<1x1xf32> to vector<8x1xf32>
    %19 = arith.addf %16, %18 : vector<8x1xf32>
    %c0_17 = arith.constant 0 : index
    %c0_18 = arith.constant 0 : index
    %20 = vector.load %arg8[%c0_17, %c0_18] : memref<8x1xf32, #tpu.memory_space<vmem>>, vector<8x1xf32>
    tpu.vector_store %arg8[%c0_17, %c0_18], %19 {strides = array<i32>} : memref<8x1xf32, #tpu.memory_space<vmem>>, vector<8x1xf32>,
    return
  }
  func.func @transform_0(%arg0: i32) -> (i32, i32) {
    %c0_i32 = arith.constant 0 : i32
    %c0_i32_0 = arith.constant 0 : i32
    return %arg0, %c0_i32 : i32, i32
  }
  func.func @transform_1(%arg0: i32) -> (i32, i32) {
    %c0_i32 = arith.constant 0 : i32
    %c0_i32_0 = arith.constant 0 : i32
    %c0_i32_1 = arith.constant 0 : i32
    return %c0_i32, %c0_i32_0 : i32, i32
  }
  func.func @transform_2(%arg0: i32) -> (i32, i32) {
    %c0_i32 = arith.constant 0 : i32
    %c0_i32_0 = arith.constant 0 : i32
    %c0_i32_1 = arith.constant 0 : i32
    return %c0_i32, %c0_i32_0 : i32, i32
  }
  func.func @transform_3(%arg0: i32) -> (i32, i32) {
    %c0_i32 = arith.constant 0 : i32
    %c0_i32_0 = arith.constant 0 : i32
    %c0_i32_1 = arith.constant 0 : i32
    return %c0_i32, %c0_i32_0 : i32, i32
  }
  func.func @transform_4(%arg0: i32) -> (i32, i32) {
    %c0_i32 = arith.constant 0 : i32
    %c0_i32_0 = arith.constant 0 : i32
    %c0_i32_1 = arith.constant 0 : i32
    return %c0_i32, %c0_i32_0 : i32, i32
  }
  func.func @transform_5(%arg0: i32) -> (i32, i32) {
    %c0_i32 = arith.constant 0 : i32
    %c0_i32_0 = arith.constant 0 : i32
    %c0_i32_1 = arith.constant 0 : i32
    return %c0_i32, %c0_i32_0 : i32, i32
  }
  func.func @transform_6(%arg0: i32) -> (i32, i32) {
    %c0_i32 = arith.constant 0 : i32
    %c0_i32_0 = arith.constant 0 : i32
    %c0_i32_1 = arith.constant 0 : i32
    return %c0_i32, %c0_i32_0 : i32, i32
  }
  func.func @transform_7(%arg0: i32) -> (i32, i32) {
    %c0_i32 = arith.constant 0 : i32
    %c0_i32_0 = arith.constant 0 : i32
    return %arg0, %c0_i32 : i32, i32
  }
}

</mosaic_0001>

<llo_original>
// kernel: _forward_impl.1
$region0: #{_forward_impl.1}
  #allocation0 [shape = 'u32[]', space=smem, size = 0x4, offset = 0x4, fixed_abs, tag = 'smem constant byte address 0x4 - core index']
  #allocation1 [shape = 'u32[144,128]{1,0:T(1,128)}', space=vmem, size = 0x12000, scoped, tag = 'internal scratch']
  #allocation2 [shape = 'f32[1,1]{1,0:T(1,128)S(1)}', space=vmem, size = 0x200, scoped, tag = 'scoped memory for _forward_impl.1']
  %s0 = inlined_call_operand.hbm [shape: f32[16,10], index: 0, kind: input, shape index: {}]
  %s1 = inlined_call_operand.hbm [shape: f32[10,50], index: 1, kind: input, shape index: {}]
  %s2 = inlined_call_operand.vmem [shape: f32[1,50], index: 2, kind: input, shape index: {}]
  %s3 = inlined_call_operand.vmem [shape: f32[50,50], index: 3, kind: input, shape index: {}]
  %s4 = inlined_call_operand.vmem [shape: f32[1,50], index: 4, kind: input, shape index: {}]
  %s5 = inlined_call_operand.vmem [shape: f32[50,1], index: 5, kind: input, shape index: {}]
  %s6 = inlined_call_operand.<no memory space> [shape: f32[1,1], index: 6, kind: input, shape index: {}]
  %s7 = inlined_call_operand.vmem [shape: f32[16,1], index: 7, kind: output, shape index: {}]
  %s8 = sld [smem:[#allocation0]]
  $region69: #{_forward_impl.1} parent=0
    _
  %s10 = ssub.s32 1, %s8
  %s11 = scalar_select 0, %s10, %s8
  %v12 = vstv %s6
  %13 = vst [vmem:[#allocation2] sm:$0x1] %v12
  $region1: #{_forward_impl.1} parent=0
    #allocation3 [shape = 'u8[8192]{0}', space=vmem, size = 0x2000, scoped, tag = 'input window, operand 0']
    #allocation4 [shape = 's32[2]{0}', space=sflag, size = 0x8, scoped, tag = 'scoped memory for _forward_impl.1']
    #allocation5 [shape = 'u8[8192]{0}', space=vmem, size = 0x2000, scoped, tag = 'input window, operand 1, single buffered']
    #allocation6 [shape = 's32[1]{0}', space=sflag, size = 0x4, scoped, tag = 'scoped memory for _forward_impl.1']
    %14 = vsyncpa [#allocation4], 0
    %s15 = scalar_lea.sflag [#allocation4], 1
    %16 = vsyncpa %s15, 0
    %17 = vsyncpa [#allocation6], 0
    loop: start=0, step=1, limit=4
    $region2: #{_forward_impl.1} parent=1 // loop_pre_header
      _
    $region3: #{_forward_impl.1} parent=1 // loop_header
      %s19 = sphi 0, %s23
      %p20 = scmp.ge.s32.totalorder %s19, 4
      %s29 = sphi 0, %s31
      %s32 = sphi 0, %s29
      %s33 = sphi 0, %s32
      %s49 = sphi 0, %s33
      %s53 = sphi 0, %s53
      %s55 = sphi 0, %s53
      %s56 = sphi 0, %s55
      %s70 = sphi 0, %s56
      %s74 = sphi 0, %s74
      %s76 = sphi 0, %s74
      %s77 = sphi 0, %s76
      %s91 = sphi 0, %s77
      %s95 = sphi 0, %s95
      %s97 = sphi 0, %s95
      %s98 = sphi 0, %s97
      %s112 = sphi 0, %s98
      %s116 = sphi 0, %s116
      %s118 = sphi 0, %s116
      %s119 = sphi 0, %s118
      %s133 = sphi 0, %s119
      %s137 = sphi 0, %s137
      %s139 = sphi 0, %s137
      %s140 = sphi 0, %s139
      %s154 = sphi 0, %s140
      %s158 = sphi 0, %s158
      %s160 = sphi 0, %s158
      %s161 = sphi 0, %s160
      %s175 = sphi 0, %s161
      %s181 = sphi 0, %s183
      %s184 = sphi 0, %s181
      %s185 = sphi 0, %s184
      %s201 = sphi 0, %s185
    $region4: #{_forward_impl.1} parent=1 // loop_header_branch
      %22 = sbr.rel (%p20) target = $region8
    $region5: #{_forward_impl.1} parent=1 // loop_body
      %s24 = ssub.s32 %s19, 1
      %s25 = ssub.s32 %s19, 2
      %s26 = sadd.s32 %s19, 1
      %s27 = ssub.s32 %s19, %s26
      %p28 = scmp.eq.s32.totalorder %s27, 0
      %s30 = sadd.s32 %s29, 1
      %s31 = scalar_select %p28, %s29, %s30
      %p34 = pneg %p28
      %p35 = scmp.eq.s32.totalorder %s19, 1
      %p36 = por %p34, %p35
      %p37 = scmp.ne.s32.totalorder %s29, %s32
      %p38 = scmp.eq.s32.totalorder %s19, 0
      %p39 = por %p37, %p38
      %p40 = scmp.ne.s32.totalorder %s29, %s32
      %p41 = scmp.eq.s32.totalorder %s24, 1
      %p42 = por %p40, %p41
      %p43 = scmp.ne.s32.totalorder %s32, %s33
      %p44 = scmp.eq.s32.totalorder %s24, 0
      %p45 = por %p43, %p44
      %p46 = scmp.ne.s32.totalorder %s32, %s33
      %p47 = scmp.eq.s32.totalorder %s25, 1
      %p48 = por %p46, %p47
      %p50 = scmp.ne.s32.totalorder %s33, %s49
      %p51 = scmp.eq.s32.totalorder %s25, 0
      %p52 = por %p50, %p51
      %s54 = sadd.s32 %s53, 1
      %p57 = scmp.eq.s32.totalorder %s19, 1
      %p58 = scmp.ne.s32.totalorder %s53, %s55
      %p59 = scmp.eq.s32.totalorder %s19, 0
      %p60 = por %p58, %p59
      %p61 = scmp.ne.s32.totalorder %s53, %s55
      %p62 = scmp.eq.s32.totalorder %s24, 1
      %p63 = por %p61, %p62
      %p64 = scmp.ne.s32.totalorder %s55, %s56
      %p65 = scmp.eq.s32.totalorder %s24, 0
      %p66 = por %p64, %p65
      %p67 = scmp.ne.s32.totalorder %s55, %s56
      %p68 = scmp.eq.s32.totalorder %s25, 1
      %p69 = por %p67, %p68
      %p71 = scmp.ne.s32.totalorder %s56, %s70
      %p72 = scmp.eq.s32.totalorder %s25, 0
      %p73 = por %p71, %p72
      %s75 = sadd.s32 %s74, 1
      %p78 = scmp.eq.s32.totalorder %s19, 1
      %p79 = scmp.ne.s32.totalorder %s74, %s76
      %p80 = scmp.eq.s32.totalorder %s19, 0
      %p81 = por %p79, %p80
      %p82 = scmp.ne.s32.totalorder %s74, %s76
      %p83 = scmp.eq.s32.totalorder %s24, 1
      %p84 = por %p82, %p83
      %p85 = scmp.ne.s32.totalorder %s76, %s77
      %p86 = scmp.eq.s32.totalorder %s24, 0
      %p87 = por %p85, %p86
      %p88 = scmp.ne.s32.totalorder %s76, %s77
      %p89 = scmp.eq.s32.totalorder %s25, 1
      %p90 = por %p88, %p89
      %p92 = scmp.ne.s32.totalorder %s77, %s91
      %p93 = scmp.eq.s32.totalorder %s25, 0
      %p94 = por %p92, %p93
      %s96 = sadd.s32 %s95, 1
      %p99 = scmp.eq.s32.totalorder %s19, 1
      %p100 = scmp.ne.s32.totalorder %s95, %s97
      %p101 = scmp.eq.s32.totalorder %s19, 0
      %p102 = por %p100, %p101
      %p103 = scmp.ne.s32.totalorder %s95, %s97
      %p104 = scmp.eq.s32.totalorder %s24, 1
      %p105 = por %p103, %p104
      %p106 = scmp.ne.s32.totalorder %s97, %s98
      %p107 = scmp.eq.s32.totalorder %s24, 0
      %p108 = por %p106, %p107
      %p109 = scmp.ne.s32.totalorder %s97, %s98
      %p110 = scmp.eq.s32.totalorder %s25, 1
      %p111 = por %p109, %p110
      %p113 = scmp.ne.s32.totalorder %s98, %s112
      %p114 = scmp.eq.s32.totalorder %s25, 0
      %p115 = por %p113, %p114
      %s117 = sadd.s32 %s116, 1
      %p120 = scmp.eq.s32.totalorder %s19, 1
      %p121 = scmp.ne.s32.totalorder %s116, %s118
      %p122 = scmp.eq.s32.totalorder %s19, 0
      %p123 = por %p121, %p122
      %p124 = scmp.ne.s32.totalorder %s116, %s118
      %p125 = scmp.eq.s32.totalorder %s24, 1
      %p126 = por %p124, %p125
      %p127 = scmp.ne.s32.totalorder %s118, %s119
      %p128 = scmp.eq.s32.totalorder %s24, 0
      %p129 = por %p127, %p128
      %p130 = scmp.ne.s32.totalorder %s118, %s119
      %p131 = scmp.eq.s32.totalorder %s25, 1
      %p132 = por %p130, %p131
      %p134 = scmp.ne.s32.totalorder %s119, %s133
      %p135 = scmp.eq.s32.totalorder %s25, 0
      %p136 = por %p134, %p135
      %s138 = sadd.s32 %s137, 1
      %p141 = scmp.eq.s32.totalorder %s19, 1
      %p142 = scmp.ne.s32.totalorder %s137, %s139
      %p143 = scmp.eq.s32.totalorder %s19, 0
      %p144 = por %p142, %p143
      %p145 = scmp.ne.s32.totalorder %s137, %s139
      %p146 = scmp.eq.s32.totalorder %s24, 1
      %p147 = por %p145, %p146
      %p148 = scmp.ne.s32.totalorder %s139, %s140
      %p149 = scmp.eq.s32.totalorder %s24, 0
      %p150 = por %p148, %p149
      %p151 = scmp.ne.s32.totalorder %s139, %s140
      %p152 = scmp.eq.s32.totalorder %s25, 1
      %p153 = por %p151, %p152
      %p155 = scmp.ne.s32.totalorder %s140, %s154
      %p156 = scmp.eq.s32.totalorder %s25, 0
      %p157 = por %p155, %p156
      %s159 = sadd.s32 %s158, 1
      %p162 = scmp.eq.s32.totalorder %s19, 1
      %p163 = scmp.ne.s32.totalorder %s158, %s160
      %p164 = scmp.eq.s32.totalorder %s19, 0
      %p165 = por %p163, %p164
      %p166 = scmp.ne.s32.totalorder %s158, %s160
      %p167 = scmp.eq.s32.totalorder %s24, 1
      %p168 = por %p166, %p167
      %p169 = scmp.ne.s32.totalorder %s160, %s161
      %p170 = scmp.eq.s32.totalorder %s24, 0
      %p171 = por %p169, %p170
      %p172 = scmp.ne.s32.totalorder %s160, %s161
      %p173 = scmp.eq.s32.totalorder %s25, 1
      %p174 = por %p172, %p173
      %p176 = scmp.ne.s32.totalorder %s161, %s175
      %p177 = scmp.eq.s32.totalorder %s25, 0
      %p178 = por %p176, %p177
      %s179 = ssub.s32 %s19, %s26
      %p180 = scmp.eq.s32.totalorder %s179, 0
      %s182 = sadd.s32 %s181, 1
      %s183 = scalar_select %p180, %s181, %s182
      %p186 = pneg %p180
      %p187 = scmp.eq.s32.totalorder %s19, 1
      %p188 = por %p186, %p187
      %p189 = scmp.ne.s32.totalorder %s181, %s184
      %p190 = scmp.eq.s32.totalorder %s19, 0
      %p191 = por %p189, %p190
      %p192 = scmp.ne.s32.totalorder %s181, %s184
      %p193 = scmp.eq.s32.totalorder %s24, 1
      %p194 = por %p192, %p193
      %p195 = scmp.ne.s32.totalorder %s184, %s185
      %p196 = scmp.eq.s32.totalorder %s24, 0
      %p197 = por %p195, %p196
      %p198 = scmp.ne.s32.totalorder %s184, %s185
      %p199 = scmp.eq.s32.totalorder %s25, 1
      %p200 = por %p198, %p199
      %p202 = scmp.ne.s32.totalorder %s185, %s201
      %p203 = scmp.eq.s32.totalorder %s25, 0
      %p204 = por %p202, %p203
      %p205 = scmp.le.s32.totalorder 1, %s19
      %p206 = scmp.lt.s32.totalorder %s19, 3
      %p207 = pnand %p205, %p206
      %p208 = pneg %p207
      // Predicated region
      $region9: #{_forward_impl.1} parent=5 // pred_check
        _
      $region10: #{_forward_impl.1} parent=5 // pred_check_branch
        %210 = sbr.rel (%p207) target = $region12
      $region11: #{_forward_impl.1} parent=5 // pred_region
        %s211 = ssub.s32 %s19, 1
        // Predicated region
        $region13: #{_forward_impl.1} parent=11 // pred_check
          %p212 = pneg %p66
        $region14: #{_forward_impl.1} parent=11 // pred_check_branch
          %214 = sbr.rel (%p212) target = $region16
        $region15: #{_forward_impl.1} parent=11 // pred_region
          %s216 = ssub.s32 256, 256
          %217 = vsyncadd [#allocation6], %s216
          %s218 = sshll.u32 [#allocation5], 4
          %s219 = int_to_ptr.vmem [resolvable:$true] %s218
          %224 = dma.hbm_to_vmem [thread:$0]  %s1, 256, %s219, [#allocation6], 128, 128, 8
        $region16: #{_forward_impl.1} parent=11 // pred_fallthru
          _
        // Predicated region
        $region17: #{_forward_impl.1} parent=11 // pred_check
          %p225 = pneg %p87
        $region18: #{_forward_impl.1} parent=11 // pred_check_branch
          %227 = sbr.rel (%p225) target = $region20
        $region19: #{_forward_impl.1} parent=11 // pred_region
          _
        $region20: #{_forward_impl.1} parent=11 // pred_fallthru
          _
        // Predicated region
        $region21: #{_forward_impl.1} parent=11 // pred_check
          %p228 = pneg %p108
        $region22: #{_forward_impl.1} parent=11 // pred_check_branch
          %230 = sbr.rel (%p228) target = $region24
        $region23: #{_forward_impl.1} parent=11 // pred_region
          _
        $region24: #{_forward_impl.1} parent=11 // pred_fallthru
          _
        // Predicated region
        $region25: #{_forward_impl.1} parent=11 // pred_check
          %p231 = pneg %p129
        $region26: #{_forward_impl.1} parent=11 // pred_check_branch
          %233 = sbr.rel (%p231) target = $region28
        $region27: #{_forward_impl.1} parent=11 // pred_region
          _
        $region28: #{_forward_impl.1} parent=11 // pred_fallthru
          _
        // Predicated region
        $region29: #{_forward_impl.1} parent=11 // pred_check
          %p234 = pneg %p150
        $region30: #{_forward_impl.1} parent=11 // pred_check_branch
          %236 = sbr.rel (%p234) target = $region32
        $region31: #{_forward_impl.1} parent=11 // pred_region
          _
        $region32: #{_forward_impl.1} parent=11 // pred_fallthru
          _
        // Predicated region
        $region33: #{_forward_impl.1} parent=11 // pred_check
          %p237 = pneg %p171
        $region34: #{_forward_impl.1} parent=11 // pred_check_branch
          %239 = sbr.rel (%p237) target = $region36
        $region35: #{_forward_impl.1} parent=11 // pred_region
          _
        $region36: #{_forward_impl.1} parent=11 // pred_fallthru
          _
      $region12: #{_forward_impl.1} parent=5 // pred_fallthru
        _
      %p240 = scmp.lt.s32.totalorder %s19, 2
      // Predicated region
      $region37: #{_forward_impl.1} parent=5 // pred_check
        %p241 = pneg %p240
      $region38: #{_forward_impl.1} parent=5 // pred_check_branch
        %243 = sbr.rel (%p241) target = $region40
      $region39: #{_forward_impl.1} parent=5 // pred_region
        // Predicated region
        $region41: #{_forward_impl.1} parent=39 // pred_check
          %p244 = pneg %p39
        $region42: #{_forward_impl.1} parent=39 // pred_check_branch
          %246 = sbr.rel (%p244) target = $region44
        $region43: #{_forward_impl.1} parent=39 // pred_region
          %s247 = sand.u32 %s29, 1
          %s248 = scalar_lea.sflag [#allocation4], %s247
          %s249 = sand.u32 %s29, 1
          %s250 = smul.addr %s249, 8
          %s251 = scalar_lea.vmem [#allocation3], %s250
          %s253 = ssub.s32 128, 128
          %254 = vsyncadd %s248, %s253
          %s255 = smul.addr %s19, 128
          %s256 = scalar_lea.hbm %s0, %s255
          %s258 = sshll.u32 %s251, 4
          %s259 = int_to_ptr.vmem [resolvable:$true] %s258
          %261 = dma.hbm_to_vmem [thread:$0]  %s256, 128, %s259, %s248
        $region44: #{_forward_impl.1} parent=39 // pred_fallthru
          _
      $region40: #{_forward_impl.1} parent=5 // pred_fallthru
        _
      %p262 = scmp.le.s32.totalorder 1, %s19
      %p263 = scmp.lt.s32.totalorder %s19, 3
      %p264 = pnand %p262, %p263
      %p265 = pneg %p264
      // Predicated region
      $region45: #{_forward_impl.1} parent=5 // pred_check
        _
      $region46: #{_forward_impl.1} parent=5 // pred_check_branch
        %267 = sbr.rel (%p264) target = $region48
      $region47: #{_forward_impl.1} parent=5 // pred_region
        %s268 = ssub.s32 %s19, 1
        %s269 = sand.u32 %s32, 1
        %s270 = scalar_lea.sflag [#allocation4], %s269
        %s271 = sand.u32 %s32, 1
        %s272 = smul.addr %s271, 8
        %s273 = scalar_lea.vmem [#allocation3], %s272
        // Predicated region
        $region49: #{_forward_impl.1} parent=47 // pred_check
          %p274 = pneg %p45
        $region50: #{_forward_impl.1} parent=47 // pred_check_branch
          %276 = sbr.rel (%p274) target = $region52
        $region51: #{_forward_impl.1} parent=47 // pred_region
          %277 = dma.done %s270, 128
        $region52: #{_forward_impl.1} parent=47 // pred_fallthru
          _
        // Predicated region
        $region53: #{_forward_impl.1} parent=47 // pred_check
          %p278 = pneg %p66
        $region54: #{_forward_impl.1} parent=47 // pred_check_branch
          %280 = sbr.rel (%p278) target = $region56
        $region55: #{_forward_impl.1} parent=47 // pred_region
          %281 = dma.done [#allocation6], 256
        $region56: #{_forward_impl.1} parent=47 // pred_fallthru
          _
        %s282 = sand.u32 %s32, 1
        %s283 = scalar_lea.sflag [#allocation4], %s282
        %s284 = sand.u32 %s32, 1
        %s285 = smul.addr %s284, 8
        %s286 = scalar_lea.vmem [#allocation3], %s285
        %p287 = pneg %p45
        %p288 = pneg %p42
        %p289 = pneg %p66
        %p290 = pneg %p63
        %p291 = pneg %p87
        %p292 = pneg %p84
        %p293 = pneg %p108
        %p294 = pneg %p105
        %p295 = pneg %p129
        %p296 = pneg %p126
        %p297 = pneg %p150
        %p298 = pneg %p147
        %p299 = pneg %p171
        %p300 = pneg %p168
        %p301 = pneg %p197
        %p302 = pneg %p194
        %p303 = scmp.lt.s32.totalorder %s24, 1
        %s304 = scalar_select %p303, %s24, 1
        %s305 = smul.addr %s304, 8
        %s306 = scalar_lea.vmem %s7, %s305
        %p307 = scmp.lt.s32.totalorder %s24, 1
        %s308 = scalar_select %p307, %s24, 1
        %s309 = smul.addr %s308, 8
        %s310 = scalar_lea.vmem %s7, %s309
        %v311 = vld [vmem:[%s273] sm:$0xff]
        %v312 = vld [vmem:[#allocation5] sm:$0xff]
        %v313 = vld [vmem:[#allocation5 + $0x8] sm:$0x3]
        %v314 = vld [vmem:[%s2] sm:$0x1]
        %v316 = vlaneseq
        %v317 = vshrl.u32 %v316, 7
        %v318 = vsub.s32 0, %v317
        %v319 = vrot.slane %v314, %v318
        %vm321 = vcmask 80896
        %v323 = vsel %vm321, %v311, 0
        %vm325 = vcmask 1041408
        %v327 = vsel %vm325, %v313, 0
        %329 = vmatprep.subr.mxu0 0.0
        %330 = vmatpush1.msra.mxu0 0.0
        %331 = vmatprep.subr.mxu0 0.0
        %332 = vmatpush1.msra.mxu0 0.0
        %333 = vmatprep.subr.mxu0 0.0
        %334 = vmatpush1.msra.mxu0 0.0
        %335 = vmatprep.subr.mxu0 0.0
        %336 = vmatpush1.msra.mxu0 0.0
        %337 = vmatprep.subr.mxu0 0.0
        %338 = vmatpush1.msra.mxu0 0.0
        %339 = vmatprep.subr.mxu0 0.0
        %340 = vmatpush1.msra.mxu0 0.0
        %341 = vmatprep.subr.mxu0 0.0
        %342 = vmatpush1.msra.mxu0 0.0
        %343 = vmatprep.subr.mxu0 0.0
        %344 = vmatpush1.msra.mxu0 0.0
        %345 = vmatprep.subr.mxu0 0.0
        %346 = vmatpush1.msra.mxu0 0.0
        %347 = vmatprep.subr.mxu0 0.0
        %348 = vmatpush1.msra.mxu0 0.0
        %349 = vmatprep.subr.mxu0 0.0
        %350 = vmatpush1.msra.mxu0 0.0
        %351 = vmatprep.subr.mxu0 0.0
        %352 = vmatpush1.msra.mxu0 0.0
        %353 = vmatprep.subr.mxu0 0.0
        %354 = vmatpush1.msra.mxu0 0.0
        %355 = vmatprep.subr.mxu0 0.0
        %356 = vmatpush1.msra.mxu0 0.0
        %357 = vmatprep.subr.mxu0 0.0
        %358 = vmatpush1.msra.mxu0 %v327
        %359 = vmatprep.subr.mxu0 0.0
        %360 = vmatpush1.msra.mxu0 %v312
        %361 = vmatprep.subr.mxu0 0.0
        %362 = vmatpush2.msra.mxu0 0.0
        %363 = vmatprep.subr.mxu0 0.0
        %364 = vmatpush2.msra.mxu0 0.0
        %365 = vmatprep.subr.mxu0 0.0
        %366 = vmatpush2.msra.mxu0 0.0
        %367 = vmatprep.subr.mxu0 0.0
        %368 = vmatpush2.msra.mxu0 0.0
        %369 = vmatprep.subr.mxu0 0.0
        %370 = vmatpush2.msra.mxu0 0.0
        %371 = vmatprep.subr.mxu0 0.0
        %372 = vmatpush2.msra.mxu0 0.0
        %373 = vmatprep.subr.mxu0 0.0
        %374 = vmatpush2.msra.mxu0 0.0
        %375 = vmatprep.subr.mxu0 0.0
        %376 = vmatpush2.msra.mxu0 0.0
        %377 = vmatprep.subr.mxu0 0.0
        %378 = vmatpush2.msra.mxu0 0.0
        %379 = vmatprep.subr.mxu0 0.0
        %380 = vmatpush2.msra.mxu0 0.0
        %381 = vmatprep.subr.mxu0 0.0
        %382 = vmatpush2.msra.mxu0 0.0
        %383 = vmatprep.subr.mxu0 0.0
        %384 = vmatpush2.msra.mxu0 0.0
        %385 = vmatprep.subr.mxu0 0.0
        %386 = vmatpush2.msra.mxu0 0.0
        %387 = vmatprep.subr.mxu0 0.0
        %388 = vmatpush2.msra.mxu0 0.0
        %389 = vmatprep.subr.mxu0 0.0
        %390 = vmatpush2.msra.mxu0 0.0
        %391 = vmatprep.subr.mxu0 0.0
        %392 = vmatpush2.msra.mxu0 0.0
        %393 = vmatprep.mubr.f32.mxu0 0.0
        %394 = vmatmul.mubr.f32.gmra.mxu0 %v323
        %v395 = vpop.f32.mrf.mxu0
        %v396 = vadd.f32 %v319, %v395
        %v397 = vpop.f32.mrf.mxu0
        %398 = vdwg.mxu0
        %v399 = vmax.f32 %v396, 0.0
        %v400 = vld [vmem:[%s3] sm:$0xff]
        %v401 = vld [vmem:[%s3 + $0x8] sm:$0xff]
        %v402 = vld [vmem:[%s3 + $0x10] sm:$0xff]
        %v403 = vld [vmem:[%s3 + $0x18] sm:$0xff]
        %v404 = vld [vmem:[%s3 + $0x20] sm:$0xff]
        %v405 = vld [vmem:[%s3 + $0x28] sm:$0xff]
        %v406 = vld [vmem:[%s3 + $0x30] sm:$0x3]
        %v407 = vld [vmem:[%s4] sm:$0x1]
        %v409 = vlaneseq
        %v410 = vshrl.u32 %v409, 7
        %v411 = vsub.s32 0, %v410
        %v412 = vrot.slane %v407, %v411
        %vm414 = vcmask 408576
        %v416 = vsel %vm414, %v399, 0
        %v419 = vsel %vm325, %v406, 0
        %421 = vmatprep.subr.mxu0 0.0
        %422 = vmatpush1.msra.mxu0 0.0
        %423 = vmatprep.subr.mxu0 0.0
        %424 = vmatpush1.msra.mxu0 0.0
        %425 = vmatprep.subr.mxu0 0.0
        %426 = vmatpush1.msra.mxu0 0.0
        %427 = vmatprep.subr.mxu0 0.0
        %428 = vmatpush1.msra.mxu0 0.0
        %429 = vmatprep.subr.mxu0 0.0
        %430 = vmatpush1.msra.mxu0 0.0
        %431 = vmatprep.subr.mxu0 0.0
        %432 = vmatpush1.msra.mxu0 0.0
        %433 = vmatprep.subr.mxu0 0.0
        %434 = vmatpush1.msra.mxu0 0.0
        %435 = vmatprep.subr.mxu0 0.0
        %436 = vmatpush1.msra.mxu0 0.0
        %437 = vmatprep.subr.mxu0 0.0
        %438 = vmatpush1.msra.mxu0 0.0
        %439 = vmatprep.subr.mxu0 0.0
        %440 = vmatpush1.msra.mxu0 %v419
        %441 = vmatprep.subr.mxu0 0.0
        %442 = vmatpush1.msra.mxu0 %v405
        %443 = vmatprep.subr.mxu0 0.0
        %444 = vmatpush1.msra.mxu0 %v404
        %445 = vmatprep.subr.mxu0 0.0
        %446 = vmatpush1.msra.mxu0 %v403
        %447 = vmatprep.subr.mxu0 0.0
        %448 = vmatpush1.msra.mxu0 %v402
        %449 = vmatprep.subr.mxu0 0.0
        %450 = vmatpush1.msra.mxu0 %v401
        %451 = vmatprep.subr.mxu0 0.0
        %452 = vmatpush1.msra.mxu0 %v400
        %453 = vmatprep.subr.mxu0 0.0
        %454 = vmatpush2.msra.mxu0 0.0
        %455 = vmatprep.subr.mxu0 0.0
        %456 = vmatpush2.msra.mxu0 0.0
        %457 = vmatprep.subr.mxu0 0.0
        %458 = vmatpush2.msra.mxu0 0.0
        %459 = vmatprep.subr.mxu0 0.0
        %460 = vmatpush2.msra.mxu0 0.0
        %461 = vmatprep.subr.mxu0 0.0
        %462 = vmatpush2.msra.mxu0 0.0
        %463 = vmatprep.subr.mxu0 0.0
        %464 = vmatpush2.msra.mxu0 0.0
        %465 = vmatprep.subr.mxu0 0.0
        %466 = vmatpush2.msra.mxu0 0.0
        %467 = vmatprep.subr.mxu0 0.0
        %468 = vmatpush2.msra.mxu0 0.0
        %469 = vmatprep.subr.mxu0 0.0
        %470 = vmatpush2.msra.mxu0 0.0
        %471 = vmatprep.subr.mxu0 0.0
        %472 = vmatpush2.msra.mxu0 0.0
        %473 = vmatprep.subr.mxu0 0.0
        %474 = vmatpush2.msra.mxu0 0.0
        %475 = vmatprep.subr.mxu0 0.0
        %476 = vmatpush2.msra.mxu0 0.0
        %477 = vmatprep.subr.mxu0 0.0
        %478 = vmatpush2.msra.mxu0 0.0
        %479 = vmatprep.subr.mxu0 0.0
        %480 = vmatpush2.msra.mxu0 0.0
        %481 = vmatprep.subr.mxu0 0.0
        %482 = vmatpush2.msra.mxu0 0.0
        %483 = vmatprep.subr.mxu0 0.0
        %484 = vmatpush2.msra.mxu0 0.0
        %485 = vmatprep.mubr.f32.mxu0 0.0
        %486 = vmatmul.mubr.f32.gmra.mxu0 %v416
        %v487 = vpop.f32.mrf.mxu0
        %v488 = vadd.f32 %v412, %v487
        %v489 = vpop.f32.mrf.mxu0
        %490 = vdwg.mxu0
        %v491 = vmax.f32 %v488, 0.0
        %v492 = vld [vmem:[%s5] sm:$0xff]
        %v493 = vld [vmem:[%s5 + $0x8] sm:$0xff]
        %v494 = vld [vmem:[%s5 + $0x10] sm:$0xff]
        %v495 = vld [vmem:[%s5 + $0x18] sm:$0xff]
        %v496 = vld [vmem:[%s5 + $0x20] sm:$0xff]
        %v497 = vld [vmem:[%s5 + $0x28] sm:$0xff]
        %v498 = vld [vmem:[%s5 + $0x30] sm:$0x3]
        %v499 = vld [vmem:[#allocation2] sm:$0x1]
        %v501 = vlaneseq
        %v502 = vshrl.u32 %v501, 7
        %v503 = vsub.s32 0, %v502
        %v504 = vrot.slane %v499, %v503
        %v507 = vsel %vm414, %v491, 0
        %v510 = vsel %vm325, %v498, 0
        %512 = vmatprep.subr.mxu0 0.0
        %513 = vmatpush1.msra.mxu0 0.0
        %514 = vmatprep.subr.mxu0 0.0
        %515 = vmatpush1.msra.mxu0 0.0
        %516 = vmatprep.subr.mxu0 0.0
        %517 = vmatpush1.msra.mxu0 0.0
        %518 = vmatprep.subr.mxu0 0.0
        %519 = vmatpush1.msra.mxu0 0.0
        %520 = vmatprep.subr.mxu0 0.0
        %521 = vmatpush1.msra.mxu0 0.0
        %522 = vmatprep.subr.mxu0 0.0
        %523 = vmatpush1.msra.mxu0 0.0
        %524 = vmatprep.subr.mxu0 0.0
        %525 = vmatpush1.msra.mxu0 0.0
        %526 = vmatprep.subr.mxu0 0.0
        %527 = vmatpush1.msra.mxu0 0.0
        %528 = vmatprep.subr.mxu0 0.0
        %529 = vmatpush1.msra.mxu0 0.0
        %530 = vmatprep.subr.mxu0 0.0
        %531 = vmatpush1.msra.mxu0 %v510
        %532 = vmatprep.subr.mxu0 0.0
        %533 = vmatpush1.msra.mxu0 %v497
        %534 = vmatprep.subr.mxu0 0.0
        %535 = vmatpush1.msra.mxu0 %v496
        %536 = vmatprep.subr.mxu0 0.0
        %537 = vmatpush1.msra.mxu0 %v495
        %538 = vmatprep.subr.mxu0 0.0
        %539 = vmatpush1.msra.mxu0 %v494
        %540 = vmatprep.subr.mxu0 0.0
        %541 = vmatpush1.msra.mxu0 %v493
        %542 = vmatprep.subr.mxu0 0.0
        %543 = vmatpush1.msra.mxu0 %v492
        %544 = vmatprep.subr.mxu0 0.0
        %545 = vmatpush2.msra.mxu0 0.0
        %546 = vmatprep.subr.mxu0 0.0
        %547 = vmatpush2.msra.mxu0 0.0
        %548 = vmatprep.subr.mxu0 0.0
        %549 = vmatpush2.msra.mxu0 0.0
        %550 = vmatprep.subr.mxu0 0.0
        %551 = vmatpush2.msra.mxu0 0.0
        %552 = vmatprep.subr.mxu0 0.0
        %553 = vmatpush2.msra.mxu0 0.0
        %554 = vmatprep.subr.mxu0 0.0
        %555 = vmatpush2.msra.mxu0 0.0
        %556 = vmatprep.subr.mxu0 0.0
        %557 = vmatpush2.msra.mxu0 0.0
        %558 = vmatprep.subr.mxu0 0.0
        %559 = vmatpush2.msra.mxu0 0.0
        %560 = vmatprep.subr.mxu0 0.0
        %561 = vmatpush2.msra.mxu0 0.0
        %562 = vmatprep.subr.mxu0 0.0
        %563 = vmatpush2.msra.mxu0 0.0
        %564 = vmatprep.subr.mxu0 0.0
        %565 = vmatpush2.msra.mxu0 0.0
        %566 = vmatprep.subr.mxu0 0.0
        %567 = vmatpush2.msra.mxu0 0.0
        %568 = vmatprep.subr.mxu0 0.0
        %569 = vmatpush2.msra.mxu0 0.0
        %570 = vmatprep.subr.mxu0 0.0
        %571 = vmatpush2.msra.mxu0 0.0
        %572 = vmatprep.subr.mxu0 0.0
        %573 = vmatpush2.msra.mxu0 0.0
        %574 = vmatprep.subr.mxu0 0.0
        %575 = vmatpush2.msra.mxu0 0.0
        %576 = vmatprep.mubr.f32.mxu0 0.0
        %577 = vmatmul.mubr.f32.gmra.mxu0 %v507
        %v578 = vpop.f32.mrf.mxu0
        %v579 = vadd.f32 %v504, %v578
        %v580 = vpop.f32.mrf.mxu0
        %581 = vdwg.mxu0
        %vm582 = vcmask 7168
        %583 = vst.msk [vmem:[%s310] sm:$0xff] %vm582, %v579
        %p584 = scmp.lt.s32.totalorder %s24, 1
        %s585 = scalar_select %p584, %s24, 1
        %s586 = smul.addr %s585, 8
        %s587 = scalar_lea.vmem %s7, %s586
        // Predicated region
        $region57: #{_forward_impl.1} parent=47 // pred_check
          %p588 = pneg %p194
        $region58: #{_forward_impl.1} parent=47 // pred_check_branch
          %590 = sbr.rel (%p588) target = $region60
        $region59: #{_forward_impl.1} parent=47 // pred_region
          _
        $region60: #{_forward_impl.1} parent=47 // pred_fallthru
          _
      $region48: #{_forward_impl.1} parent=5 // pred_fallthru
        _
      %p591 = scmp.le.s32.totalorder 2, %s19
      // Predicated region
      $region61: #{_forward_impl.1} parent=5 // pred_check
        %p592 = pneg %p591
      $region62: #{_forward_impl.1} parent=5 // pred_check_branch
        %594 = sbr.rel (%p592) target = $region64
      $region63: #{_forward_impl.1} parent=5 // pred_region
        %s595 = ssub.s32 %s19, 2
        // Predicated region
        $region65: #{_forward_impl.1} parent=63 // pred_check
          %p596 = pneg %p200
        $region66: #{_forward_impl.1} parent=63 // pred_check_branch
          %598 = sbr.rel (%p596) target = $region68
        $region67: #{_forward_impl.1} parent=63 // pred_region
          %p599 = scmp.lt.s32.totalorder %s25, 1
          %s600 = scalar_select %p599, %s25, 1
          %s601 = smul.addr %s600, 8
          %s602 = scalar_lea.vmem %s7, %s601
        $region68: #{_forward_impl.1} parent=63 // pred_fallthru
          _
      $region64: #{_forward_impl.1} parent=5 // pred_fallthru
        _
    $region6: #{_forward_impl.1} parent=1 // loop_footer
      %s23 = sadd.s32 1, %s19
    $region7: #{_forward_impl.1} parent=1 // loop_footer_branch
      %18 = sbr.rel target = $region3
    $region8: #{_forward_impl.1} parent=1 // loop_exit
      _
    %603 = vsyncpa [#allocation4], 1
    %s604 = scalar_lea.sflag [#allocation4], 1
    %605 = vsyncpa %s604, 1
    %606 = vsyncpa [#allocation6], 1

// kernel: _forward_impl.1
$region0: #{_forward_impl.1}
  #allocation0 [shape = 'u32[]', space=smem, size = 0x4, offset = 0x4, fixed_abs, tag = 'smem constant byte address 0x4 - core index']
  #allocation1 [shape = 'u32[144,128]{1,0:T(1,128)}', space=vmem, size = 0x12000, scoped, tag = 'internal scratch']
  #allocation2 [shape = 'f32[1,1]{1,0:T(1,128)S(1)}', space=vmem, size = 0x200, scoped, tag = 'scoped memory for _forward_impl.1']
  %s0 = inlined_call_operand.hbm [shape: f32[16,10], index: 0, kind: input, shape index: {}]
  %s1 = inlined_call_operand.hbm [shape: f32[10,50], index: 1, kind: input, shape index: {}]
  %s2 = inlined_call_operand.vmem [shape: f32[1,50], index: 2, kind: input, shape index: {}]
  %s3 = inlined_call_operand.vmem [shape: f32[50,50], index: 3, kind: input, shape index: {}]
  %s4 = inlined_call_operand.vmem [shape: f32[1,50], index: 4, kind: input, shape index: {}]
  %s5 = inlined_call_operand.vmem [shape: f32[50,1], index: 5, kind: input, shape index: {}]
  %s6 = inlined_call_operand.<no memory space> [shape: f32[1,1], index: 6, kind: input, shape index: {}]
  %s7 = inlined_call_operand.vmem [shape: f32[16,1], index: 7, kind: output, shape index: {}]
  %s8 = sld [smem:[#allocation0]]
  $region69: #{_forward_impl.1} parent=0
    _
  %s10 = ssub.s32 1, %s8
  %s11 = scalar_select 0, %s10, %s8
  %v12 = vstv %s6
  %13 = vst [vmem:[#allocation2] sm:$0x1] %v12
  $region1: #{_forward_impl.1} parent=0
    #allocation3 [shape = 'u8[8192]{0}', space=vmem, size = 0x2000, scoped, tag = 'input window, operand 0']
    #allocation4 [shape = 's32[2]{0}', space=sflag, size = 0x8, scoped, tag = 'scoped memory for _forward_impl.1']
    #allocation5 [shape = 'u8[8192]{0}', space=vmem, size = 0x2000, scoped, tag = 'input window, operand 1, single buffered']
    #allocation6 [shape = 's32[1]{0}', space=sflag, size = 0x4, scoped, tag = 'scoped memory for _forward_impl.1']
    %14 = vsyncpa [#allocation4], 0
    %s15 = scalar_lea.sflag [#allocation4], 1
    %16 = vsyncpa %s15, 0
    %17 = vsyncpa [#allocation6], 0
    loop: start=0, step=1, limit=4
    $region2: #{_forward_impl.1} parent=1 // loop_pre_header
      _
    $region3: #{_forward_impl.1} parent=1 // loop_header
      %s19 = sphi 0, %s23
      %p20 = scmp.ge.s32.totalorder %s19, 4
      %s29 = sphi 0, %s31
      %s32 = sphi 0, %s29
      %s33 = sphi 0, %s32
      %s49 = sphi 0, %s33
      %s53 = sphi 0, %s53
      %s55 = sphi 0, %s53
      %s56 = sphi 0, %s55
      %s70 = sphi 0, %s56
      %s74 = sphi 0, %s74
      %s76 = sphi 0, %s74
      %s77 = sphi 0, %s76
      %s91 = sphi 0, %s77
      %s95 = sphi 0, %s95
      %s97 = sphi 0, %s95
      %s98 = sphi 0, %s97
      %s112 = sphi 0, %s98
      %s116 = sphi 0, %s116
      %s118 = sphi 0, %s116
      %s119 = sphi 0, %s118
      %s133 = sphi 0, %s119
      %s137 = sphi 0, %s137
      %s139 = sphi 0, %s137
      %s140 = sphi 0, %s139
      %s154 = sphi 0, %s140
      %s158 = sphi 0, %s158
      %s160 = sphi 0, %s158
      %s161 = sphi 0, %s160
      %s175 = sphi 0, %s161
      %s181 = sphi 0, %s183
      %s184 = sphi 0, %s181
      %s185 = sphi 0, %s184
      %s201 = sphi 0, %s185
    $region4: #{_forward_impl.1} parent=1 // loop_header_branch
      %22 = sbr.rel (%p20) target = $region8
    $region5: #{_forward_impl.1} parent=1 // loop_body
      %s24 = ssub.s32 %s19, 1
      %s25 = ssub.s32 %s19, 2
      %s26 = sadd.s32 %s19, 1
      %s27 = ssub.s32 %s19, %s26
      %p28 = scmp.eq.s32.totalorder %s27, 0
      %s30 = sadd.s32 %s29, 1
      %s31 = scalar_select %p28, %s29, %s30
      %p34 = pneg %p28
      %p35 = scmp.eq.s32.totalorder %s19, 1
      %p36 = por %p34, %p35
      %p37 = scmp.ne.s32.totalorder %s29, %s32
      %p38 = scmp.eq.s32.totalorder %s19, 0
      %p39 = por %p37, %p38
      %p40 = scmp.ne.s32.totalorder %s29, %s32
      %p41 = scmp.eq.s32.totalorder %s24, 1
      %p42 = por %p40, %p41
      %p43 = scmp.ne.s32.totalorder %s32, %s33
      %p44 = scmp.eq.s32.totalorder %s24, 0
      %p45 = por %p43, %p44
      %p46 = scmp.ne.s32.totalorder %s32, %s33
      %p47 = scmp.eq.s32.totalorder %s25, 1
      %p48 = por %p46, %p47
      %p50 = scmp.ne.s32.totalorder %s33, %s49
      %p51 = scmp.eq.s32.totalorder %s25, 0
      %p52 = por %p50, %p51
      %s54 = sadd.s32 %s53, 1
      %p57 = scmp.eq.s32.totalorder %s19, 1
      %p58 = scmp.ne.s32.totalorder %s53, %s55
      %p59 = scmp.eq.s32.totalorder %s19, 0
      %p60 = por %p58, %p59
      %p61 = scmp.ne.s32.totalorder %s53, %s55
      %p62 = scmp.eq.s32.totalorder %s24, 1
      %p63 = por %p61, %p62
      %p64 = scmp.ne.s32.totalorder %s55, %s56
      %p65 = scmp.eq.s32.totalorder %s24, 0
      %p66 = por %p64, %p65
      %p67 = scmp.ne.s32.totalorder %s55, %s56
      %p68 = scmp.eq.s32.totalorder %s25, 1
      %p69 = por %p67, %p68
      %p71 = scmp.ne.s32.totalorder %s56, %s70
      %p72 = scmp.eq.s32.totalorder %s25, 0
      %p73 = por %p71, %p72
      %s75 = sadd.s32 %s74, 1
      %p78 = scmp.eq.s32.totalorder %s19, 1
      %p79 = scmp.ne.s32.totalorder %s74, %s76
      %p80 = scmp.eq.s32.totalorder %s19, 0
      %p81 = por %p79, %p80
      %p82 = scmp.ne.s32.totalorder %s74, %s76
      %p83 = scmp.eq.s32.totalorder %s24, 1
      %p84 = por %p82, %p83
      %p85 = scmp.ne.s32.totalorder %s76, %s77
      %p86 = scmp.eq.s32.totalorder %s24, 0
      %p87 = por %p85, %p86
      %p88 = scmp.ne.s32.totalorder %s76, %s77
      %p89 = scmp.eq.s32.totalorder %s25, 1
      %p90 = por %p88, %p89
      %p92 = scmp.ne.s32.totalorder %s77, %s91
      %p93 = scmp.eq.s32.totalorder %s25, 0
      %p94 = por %p92, %p93
      %s96 = sadd.s32 %s95, 1
      %p99 = scmp.eq.s32.totalorder %s19, 1
      %p100 = scmp.ne.s32.totalorder %s95, %s97
      %p101 = scmp.eq.s32.totalorder %s19, 0
      %p102 = por %p100, %p101
      %p103 = scmp.ne.s32.totalorder %s95, %s97
      %p104 = scmp.eq.s32.totalorder %s24, 1
      %p105 = por %p103, %p104
      %p106 = scmp.ne.s32.totalorder %s97, %s98
      %p107 = scmp.eq.s32.totalorder %s24, 0
      %p108 = por %p106, %p107
      %p109 = scmp.ne.s32.totalorder %s97, %s98
      %p110 = scmp.eq.s32.totalorder %s25, 1
      %p111 = por %p109, %p110
      %p113 = scmp.ne.s32.totalorder %s98, %s112
      %p114 = scmp.eq.s32.totalorder %s25, 0
      %p115 = por %p113, %p114
      %s117 = sadd.s32 %s116, 1
      %p120 = scmp.eq.s32.totalorder %s19, 1
      %p121 = scmp.ne.s32.totalorder %s116, %s118
      %p122 = scmp.eq.s32.totalorder %s19, 0
      %p123 = por %p121, %p122
      %p124 = scmp.ne.s32.totalorder %s116, %s118
      %p125 = scmp.eq.s32.totalorder %s24, 1
      %p126 = por %p124, %p125
      %p127 = scmp.ne.s32.totalorder %s118, %s119
      %p128 = scmp.eq.s32.totalorder %s24, 0
      %p129 = por %p127, %p128
      %p130 = scmp.ne.s32.totalorder %s118, %s119
      %p131 = scmp.eq.s32.totalorder %s25, 1
      %p132 = por %p130, %p131
      %p134 = scmp.ne.s32.totalorder %s119, %s133
      %p135 = scmp.eq.s32.totalorder %s25, 0
      %p136 = por %p134, %p135
      %s138 = sadd.s32 %s137, 1
      %p141 = scmp.eq.s32.totalorder %s19, 1
      %p142 = scmp.ne.s32.totalorder %s137, %s139
      %p143 = scmp.eq.s32.totalorder %s19, 0
      %p144 = por %p142, %p143
      %p145 = scmp.ne.s32.totalorder %s137, %s139
      %p146 = scmp.eq.s32.totalorder %s24, 1
      %p147 = por %p145, %p146
      %p148 = scmp.ne.s32.totalorder %s139, %s140
      %p149 = scmp.eq.s32.totalorder %s24, 0
      %p150 = por %p148, %p149
      %p151 = scmp.ne.s32.totalorder %s139, %s140
      %p152 = scmp.eq.s32.totalorder %s25, 1
      %p153 = por %p151, %p152
      %p155 = scmp.ne.s32.totalorder %s140, %s154
      %p156 = scmp.eq.s32.totalorder %s25, 0
      %p157 = por %p155, %p156
      %s159 = sadd.s32 %s158, 1
      %p162 = scmp.eq.s32.totalorder %s19, 1
      %p163 = scmp.ne.s32.totalorder %s158, %s160
      %p164 = scmp.eq.s32.totalorder %s19, 0
      %p165 = por %p163, %p164
      %p166 = scmp.ne.s32.totalorder %s158, %s160
      %p167 = scmp.eq.s32.totalorder %s24, 1
      %p168 = por %p166, %p167
      %p169 = scmp.ne.s32.totalorder %s160, %s161
      %p170 = scmp.eq.s32.totalorder %s24, 0
      %p171 = por %p169, %p170
      %p172 = scmp.ne.s32.totalorder %s160, %s161
      %p173 = scmp.eq.s32.totalorder %s25, 1
      %p174 = por %p172, %p173
      %p176 = scmp.ne.s32.totalorder %s161, %s175
      %p177 = scmp.eq.s32.totalorder %s25, 0
      %p178 = por %p176, %p177
      %s179 = ssub.s32 %s19, %s26
      %p180 = scmp.eq.s32.totalorder %s179, 0
      %s182 = sadd.s32 %s181, 1
      %s183 = scalar_select %p180, %s181, %s182
      %p186 = pneg %p180
      %p187 = scmp.eq.s32.totalorder %s19, 1
      %p188 = por %p186, %p187
      %p189 = scmp.ne.s32.totalorder %s181, %s184
      %p190 = scmp.eq.s32.totalorder %s19, 0
      %p191 = por %p189, %p190
      %p192 = scmp.ne.s32.totalorder %s181, %s184
      %p193 = scmp.eq.s32.totalorder %s24, 1
      %p194 = por %p192, %p193
      %p195 = scmp.ne.s32.totalorder %s184, %s185
      %p196 = scmp.eq.s32.totalorder %s24, 0
      %p197 = por %p195, %p196
      %p198 = scmp.ne.s32.totalorder %s184, %s185
      %p199 = scmp.eq.s32.totalorder %s25, 1
      %p200 = por %p198, %p199
      %p202 = scmp.ne.s32.totalorder %s185, %s201
      %p203 = scmp.eq.s32.totalorder %s25, 0
      %p204 = por %p202, %p203
      %p205 = scmp.le.s32.totalorder 1, %s19
      %p206 = scmp.lt.s32.totalorder %s19, 3
      %p207 = pnand %p205, %p206
      %p208 = pneg %p207
      // Predicated region
      $region9: #{_forward_impl.1} parent=5 // pred_check
        _
      $region10: #{_forward_impl.1} parent=5 // pred_check_branch
        %210 = sbr.rel (%p207) target = $region12
      $region11: #{_forward_impl.1} parent=5 // pred_region
        %s211 = ssub.s32 %s19, 1
        // Predicated region
        $region13: #{_forward_impl.1} parent=11 // pred_check
          %p212 = pneg %p66
        $region14: #{_forward_impl.1} parent=11 // pred_check_branch
          %214 = sbr.rel (%p212) target = $region16
        $region15: #{_forward_impl.1} parent=11 // pred_region
          %s216 = ssub.s32 256, 256
          %217 = vsyncadd [#allocation6], %s216
          %s218 = sshll.u32 [#allocation5], 4
          %s219 = int_to_ptr.vmem [resolvable:$true] %s218
          %224 = dma.hbm_to_vmem [thread:$0]  %s1, 256, %s219, [#allocation6], 128, 128, 8
        $region16: #{_forward_impl.1} parent=11 // pred_fallthru
          _
        // Predicated region
        $region17: #{_forward_impl.1} parent=11 // pred_check
          %p225 = pneg %p87
        $region18: #{_forward_impl.1} parent=11 // pred_check_branch
          %227 = sbr.rel (%p225) target = $region20
        $region19: #{_forward_impl.1} parent=11 // pred_region
          _
        $region20: #{_forward_impl.1} parent=11 // pred_fallthru
          _
        // Predicated region
        $region21: #{_forward_impl.1} parent=11 // pred_check
          %p228 = pneg %p108
        $region22: #{_forward_impl.1} parent=11 // pred_check_branch
          %230 = sbr.rel (%p228) target = $region24
        $region23: #{_forward_impl.1} parent=11 // pred_region
          _
        $region24: #{_forward_impl.1} parent=11 // pred_fallthru
          _
        // Predicated region
        $region25: #{_forward_impl.1} parent=11 // pred_check
          %p231 = pneg %p129
        $region26: #{_forward_impl.1} parent=11 // pred_check_branch
          %233 = sbr.rel (%p231) target = $region28
        $region27: #{_forward_impl.1} parent=11 // pred_region
          _
        $region28: #{_forward_impl.1} parent=11 // pred_fallthru
          _
        // Predicated region
        $region29: #{_forward_impl.1} parent=11 // pred_check
          %p234 = pneg %p150
        $region30: #{_forward_impl.1} parent=11 // pred_check_branch
          %236 = sbr.rel (%p234) target = $region32
        $region31: #{_forward_impl.1} parent=11 // pred_region
          _
        $region32: #{_forward_impl.1} parent=11 // pred_fallthru
          _
        // Predicated region
        $region33: #{_forward_impl.1} parent=11 // pred_check
          %p237 = pneg %p171
        $region34: #{_forward_impl.1} parent=11 // pred_check_branch
          %239 = sbr.rel (%p237) target = $region36
        $region35: #{_forward_impl.1} parent=11 // pred_region
          _
        $region36: #{_forward_impl.1} parent=11 // pred_fallthru
          _
      $region12: #{_forward_impl.1} parent=5 // pred_fallthru
        _
      %p240 = scmp.lt.s32.totalorder %s19, 2
      // Predicated region
      $region37: #{_forward_impl.1} parent=5 // pred_check
        %p241 = pneg %p240
      $region38: #{_forward_impl.1} parent=5 // pred_check_branch
        %243 = sbr.rel (%p241) target = $region40
      $region39: #{_forward_impl.1} parent=5 // pred_region
        // Predicated region
        $region41: #{_forward_impl.1} parent=39 // pred_check
          %p244 = pneg %p39
        $region42: #{_forward_impl.1} parent=39 // pred_check_branch
          %246 = sbr.rel (%p244) target = $region44
        $region43: #{_forward_impl.1} parent=39 // pred_region
          %s247 = sand.u32 %s29, 1
          %s248 = scalar_lea.sflag [#allocation4], %s247
          %s249 = sand.u32 %s29, 1
          %s250 = smul.addr %s249, 8
          %s251 = scalar_lea.vmem [#allocation3], %s250
          %s253 = ssub.s32 128, 128
          %254 = vsyncadd %s248, %s253
          %s255 = smul.addr %s19, 128
          %s256 = scalar_lea.hbm %s0, %s255
          %s258 = sshll.u32 %s251, 4
          %s259 = int_to_ptr.vmem [resolvable:$true] %s258
          %261 = dma.hbm_to_vmem [thread:$0]  %s256, 128, %s259, %s248
        $region44: #{_forward_impl.1} parent=39 // pred_fallthru
          _
      $region40: #{_forward_impl.1} parent=5 // pred_fallthru
        _
      %p262 = scmp.le.s32.totalorder 1, %s19
      %p263 = scmp.lt.s32.totalorder %s19, 3
      %p264 = pnand %p262, %p263
      %p265 = pneg %p264
      // Predicated region
      $region45: #{_forward_impl.1} parent=5 // pred_check
        _
      $region46: #{_forward_impl.1} parent=5 // pred_check_branch
        %267 = sbr.rel (%p264) target = $region48
      $region47: #{_forward_impl.1} parent=5 // pred_region
        %s268 = ssub.s32 %s19, 1
        %s269 = sand.u32 %s32, 1
        %s270 = scalar_lea.sflag [#allocation4], %s269
        %s271 = sand.u32 %s32, 1
        %s272 = smul.addr %s271, 8
        %s273 = scalar_lea.vmem [#allocation3], %s272
        // Predicated region
        $region49: #{_forward_impl.1} parent=47 // pred_check
          %p274 = pneg %p45
        $region50: #{_forward_impl.1} parent=47 // pred_check_branch
          %276 = sbr.rel (%p274) target = $region52
        $region51: #{_forward_impl.1} parent=47 // pred_region
          %277 = dma.done %s270, 128
        $region52: #{_forward_impl.1} parent=47 // pred_fallthru
          _
        // Predicated region
        $region53: #{_forward_impl.1} parent=47 // pred_check
          %p278 = pneg %p66
        $region54: #{_forward_impl.1} parent=47 // pred_check_branch
          %280 = sbr.rel (%p278) target = $region56
        $region55: #{_forward_impl.1} parent=47 // pred_region
          %281 = dma.done [#allocation6], 256
        $region56: #{_forward_impl.1} parent=47 // pred_fallthru
          _
        %s282 = sand.u32 %s32, 1
        %s283 = scalar_lea.sflag [#allocation4], %s282
        %s284 = sand.u32 %s32, 1
        %s285 = smul.addr %s284, 8
        %s286 = scalar_lea.vmem [#allocation3], %s285
        %p287 = pneg %p45
        %p288 = pneg %p42
        %p289 = pneg %p66
        %p290 = pneg %p63
        %p291 = pneg %p87
        %p292 = pneg %p84
        %p293 = pneg %p108
        %p294 = pneg %p105
        %p295 = pneg %p129
        %p296 = pneg %p126
        %p297 = pneg %p150
        %p298 = pneg %p147
        %p299 = pneg %p171
        %p300 = pneg %p168
        %p301 = pneg %p197
        %p302 = pneg %p194
        %p303 = scmp.lt.s32.totalorder %s24, 1
        %s304 = scalar_select %p303, %s24, 1
        %s305 = smul.addr %s304, 8
        %s306 = scalar_lea.vmem %s7, %s305
        %p307 = scmp.lt.s32.totalorder %s24, 1
        %s308 = scalar_select %p307, %s24, 1
        %s309 = smul.addr %s308, 8
        %s310 = scalar_lea.vmem %s7, %s309
        %v311 = vld [vmem:[%s273] sm:$0xff]
        %v312 = vld [vmem:[#allocation5] sm:$0xff]
        %v313 = vld [vmem:[#allocation5 + $0x8] sm:$0x3]
        %v314 = vld [vmem:[%s2] sm:$0x1]
        %v316 = vlaneseq
        %v317 = vshrl.u32 %v316, 7
        %v318 = vsub.s32 0, %v317
        %v319 = vrot.slane %v314, %v318
        %vm321 = vcmask 80896
        %v323 = vsel %vm321, %v311, 0
        %vm325 = vcmask 1041408
        %v327 = vsel %vm325, %v313, 0
        %329 = vmatprep.subr.mxu0 0.0
        %330 = vmatpush1.msra.mxu0 0.0
        %331 = vmatprep.subr.mxu0 0.0
        %332 = vmatpush1.msra.mxu0 0.0
        %333 = vmatprep.subr.mxu0 0.0
        %334 = vmatpush1.msra.mxu0 0.0
        %335 = vmatprep.subr.mxu0 0.0
        %336 = vmatpush1.msra.mxu0 0.0
        %337 = vmatprep.subr.mxu0 0.0
        %338 = vmatpush1.msra.mxu0 0.0
        %339 = vmatprep.subr.mxu0 0.0
        %340 = vmatpush1.msra.mxu0 0.0
        %341 = vmatprep.subr.mxu0 0.0
        %342 = vmatpush1.msra.mxu0 0.0
        %343 = vmatprep.subr.mxu0 0.0
        %344 = vmatpush1.msra.mxu0 0.0
        %345 = vmatprep.subr.mxu0 0.0
        %346 = vmatpush1.msra.mxu0 0.0
        %347 = vmatprep.subr.mxu0 0.0
        %348 = vmatpush1.msra.mxu0 0.0
        %349 = vmatprep.subr.mxu0 0.0
        %350 = vmatpush1.msra.mxu0 0.0
        %351 = vmatprep.subr.mxu0 0.0
        %352 = vmatpush1.msra.mxu0 0.0
        %353 = vmatprep.subr.mxu0 0.0
        %354 = vmatpush1.msra.mxu0 0.0
        %355 = vmatprep.subr.mxu0 0.0
        %356 = vmatpush1.msra.mxu0 0.0
        %357 = vmatprep.subr.mxu0 0.0
        %358 = vmatpush1.msra.mxu0 %v327
        %359 = vmatprep.subr.mxu0 0.0
        %360 = vmatpush1.msra.mxu0 %v312
        %361 = vmatprep.subr.mxu0 0.0
        %362 = vmatpush2.msra.mxu0 0.0
        %363 = vmatprep.subr.mxu0 0.0
        %364 = vmatpush2.msra.mxu0 0.0
        %365 = vmatprep.subr.mxu0 0.0
        %366 = vmatpush2.msra.mxu0 0.0
        %367 = vmatprep.subr.mxu0 0.0
        %368 = vmatpush2.msra.mxu0 0.0
        %369 = vmatprep.subr.mxu0 0.0
        %370 = vmatpush2.msra.mxu0 0.0
        %371 = vmatprep.subr.mxu0 0.0
        %372 = vmatpush2.msra.mxu0 0.0
        %373 = vmatprep.subr.mxu0 0.0
        %374 = vmatpush2.msra.mxu0 0.0
        %375 = vmatprep.subr.mxu0 0.0
        %376 = vmatpush2.msra.mxu0 0.0
        %377 = vmatprep.subr.mxu0 0.0
        %378 = vmatpush2.msra.mxu0 0.0
        %379 = vmatprep.subr.mxu0 0.0
        %380 = vmatpush2.msra.mxu0 0.0
        %381 = vmatprep.subr.mxu0 0.0
        %382 = vmatpush2.msra.mxu0 0.0
        %383 = vmatprep.subr.mxu0 0.0
        %384 = vmatpush2.msra.mxu0 0.0
        %385 = vmatprep.subr.mxu0 0.0
        %386 = vmatpush2.msra.mxu0 0.0
        %387 = vmatprep.subr.mxu0 0.0
        %388 = vmatpush2.msra.mxu0 0.0
        %389 = vmatprep.subr.mxu0 0.0
        %390 = vmatpush2.msra.mxu0 0.0
        %391 = vmatprep.subr.mxu0 0.0
        %392 = vmatpush2.msra.mxu0 0.0
        %393 = vmatprep.mubr.f32.mxu0 0.0
        %394 = vmatmul.mubr.f32.gmra.mxu0 %v323
        %v395 = vpop.f32.mrf.mxu0
        %v396 = vadd.f32 %v319, %v395
        %v397 = vpop.f32.mrf.mxu0
        %398 = vdwg.mxu0
        %v399 = vmax.f32 %v396, 0.0
        %v400 = vld [vmem:[%s3] sm:$0xff]
        %v401 = vld [vmem:[%s3 + $0x8] sm:$0xff]
        %v402 = vld [vmem:[%s3 + $0x10] sm:$0xff]
        %v403 = vld [vmem:[%s3 + $0x18] sm:$0xff]
        %v404 = vld [vmem:[%s3 + $0x20] sm:$0xff]
        %v405 = vld [vmem:[%s3 + $0x28] sm:$0xff]
        %v406 = vld [vmem:[%s3 + $0x30] sm:$0x3]
        %v407 = vld [vmem:[%s4] sm:$0x1]
        %v409 = vlaneseq
        %v410 = vshrl.u32 %v409, 7
        %v411 = vsub.s32 0, %v410
        %v412 = vrot.slane %v407, %v411
        %vm414 = vcmask 408576
        %v416 = vsel %vm414, %v399, 0
        %v419 = vsel %vm325, %v406, 0
        %421 = vmatprep.subr.mxu0 0.0
        %422 = vmatpush1.msra.mxu0 0.0
        %423 = vmatprep.subr.mxu0 0.0
        %424 = vmatpush1.msra.mxu0 0.0
        %425 = vmatprep.subr.mxu0 0.0
        %426 = vmatpush1.msra.mxu0 0.0
        %427 = vmatprep.subr.mxu0 0.0
        %428 = vmatpush1.msra.mxu0 0.0
        %429 = vmatprep.subr.mxu0 0.0
        %430 = vmatpush1.msra.mxu0 0.0
        %431 = vmatprep.subr.mxu0 0.0
        %432 = vmatpush1.msra.mxu0 0.0
        %433 = vmatprep.subr.mxu0 0.0
        %434 = vmatpush1.msra.mxu0 0.0
        %435 = vmatprep.subr.mxu0 0.0
        %436 = vmatpush1.msra.mxu0 0.0
        %437 = vmatprep.subr.mxu0 0.0
        %438 = vmatpush1.msra.mxu0 0.0
        %439 = vmatprep.subr.mxu0 0.0
        %440 = vmatpush1.msra.mxu0 %v419
        %441 = vmatprep.subr.mxu0 0.0
        %442 = vmatpush1.msra.mxu0 %v405
        %443 = vmatprep.subr.mxu0 0.0
        %444 = vmatpush1.msra.mxu0 %v404
        %445 = vmatprep.subr.mxu0 0.0
        %446 = vmatpush1.msra.mxu0 %v403
        %447 = vmatprep.subr.mxu0 0.0
        %448 = vmatpush1.msra.mxu0 %v402
        %449 = vmatprep.subr.mxu0 0.0
        %450 = vmatpush1.msra.mxu0 %v401
        %451 = vmatprep.subr.mxu0 0.0
        %452 = vmatpush1.msra.mxu0 %v400
        %453 = vmatprep.subr.mxu0 0.0
        %454 = vmatpush2.msra.mxu0 0.0
        %455 = vmatprep.subr.mxu0 0.0
        %456 = vmatpush2.msra.mxu0 0.0
        %457 = vmatprep.subr.mxu0 0.0
        %458 = vmatpush2.msra.mxu0 0.0
        %459 = vmatprep.subr.mxu0 0.0
        %460 = vmatpush2.msra.mxu0 0.0
        %461 = vmatprep.subr.mxu0 0.0
        %462 = vmatpush2.msra.mxu0 0.0
        %463 = vmatprep.subr.mxu0 0.0
        %464 = vmatpush2.msra.mxu0 0.0
        %465 = vmatprep.subr.mxu0 0.0
        %466 = vmatpush2.msra.mxu0 0.0
        %467 = vmatprep.subr.mxu0 0.0
        %468 = vmatpush2.msra.mxu0 0.0
        %469 = vmatprep.subr.mxu0 0.0
        %470 = vmatpush2.msra.mxu0 0.0
        %471 = vmatprep.subr.mxu0 0.0
        %472 = vmatpush2.msra.mxu0 0.0
        %473 = vmatprep.subr.mxu0 0.0
        %474 = vmatpush2.msra.mxu0 0.0
        %475 = vmatprep.subr.mxu0 0.0
        %476 = vmatpush2.msra.mxu0 0.0
        %477 = vmatprep.subr.mxu0 0.0
        %478 = vmatpush2.msra.mxu0 0.0
        %479 = vmatprep.subr.mxu0 0.0
        %480 = vmatpush2.msra.mxu0 0.0
        %481 = vmatprep.subr.mxu0 0.0
        %482 = vmatpush2.msra.mxu0 0.0
        %483 = vmatprep.subr.mxu0 0.0
        %484 = vmatpush2.msra.mxu0 0.0
        %485 = vmatprep.mubr.f32.mxu0 0.0
        %486 = vmatmul.mubr.f32.gmra.mxu0 %v416
        %v487 = vpop.f32.mrf.mxu0
        %v488 = vadd.f32 %v412, %v487
        %v489 = vpop.f32.mrf.mxu0
        %490 = vdwg.mxu0
        %v491 = vmax.f32 %v488, 0.0
        %v492 = vld [vmem:[%s5] sm:$0xff]
        %v493 = vld [vmem:[%s5 + $0x8] sm:$0xff]
        %v494 = vld [vmem:[%s5 + $0x10] sm:$0xff]
        %v495 = vld [vmem:[%s5 + $0x18] sm:$0xff]
        %v496 = vld [vmem:[%s5 + $0x20] sm:$0xff]
        %v497 = vld [vmem:[%s5 + $0x28] sm:$0xff]
        %v498 = vld [vmem:[%s5 + $0x30] sm:$0x3]
        %v499 = vld [vmem:[#allocation2] sm:$0x1]
        %v501 = vlaneseq
        %v502 = vshrl.u32 %v501, 7
        %v503 = vsub.s32 0, %v502
        %v504 = vrot.slane %v499, %v503
        %v507 = vsel %vm414, %v491, 0
        %v510 = vsel %vm325, %v498, 0
        %512 = vmatprep.subr.mxu0 0.0
        %513 = vmatpush1.msra.mxu0 0.0
        %514 = vmatprep.subr.mxu0 0.0
        %515 = vmatpush1.msra.mxu0 0.0
        %516 = vmatprep.subr.mxu0 0.0
        %517 = vmatpush1.msra.mxu0 0.0
        %518 = vmatprep.subr.mxu0 0.0
        %519 = vmatpush1.msra.mxu0 0.0
        %520 = vmatprep.subr.mxu0 0.0
        %521 = vmatpush1.msra.mxu0 0.0
        %522 = vmatprep.subr.mxu0 0.0
        %523 = vmatpush1.msra.mxu0 0.0
        %524 = vmatprep.subr.mxu0 0.0
        %525 = vmatpush1.msra.mxu0 0.0
        %526 = vmatprep.subr.mxu0 0.0
        %527 = vmatpush1.msra.mxu0 0.0
        %528 = vmatprep.subr.mxu0 0.0
        %529 = vmatpush1.msra.mxu0 0.0
        %530 = vmatprep.subr.mxu0 0.0
        %531 = vmatpush1.msra.mxu0 %v510
        %532 = vmatprep.subr.mxu0 0.0
        %533 = vmatpush1.msra.mxu0 %v497
        %534 = vmatprep.subr.mxu0 0.0
        %535 = vmatpush1.msra.mxu0 %v496
        %536 = vmatprep.subr.mxu0 0.0
        %537 = vmatpush1.msra.mxu0 %v495
        %538 = vmatprep.subr.mxu0 0.0
        %539 = vmatpush1.msra.mxu0 %v494
        %540 = vmatprep.subr.mxu0 0.0
        %541 = vmatpush1.msra.mxu0 %v493
        %542 = vmatprep.subr.mxu0 0.0
        %543 = vmatpush1.msra.mxu0 %v492
        %544 = vmatprep.subr.mxu0 0.0
        %545 = vmatpush2.msra.mxu0 0.0
        %546 = vmatprep.subr.mxu0 0.0
        %547 = vmatpush2.msra.mxu0 0.0
        %548 = vmatprep.subr.mxu0 0.0
        %549 = vmatpush2.msra.mxu0 0.0
        %550 = vmatprep.subr.mxu0 0.0
        %551 = vmatpush2.msra.mxu0 0.0
        %552 = vmatprep.subr.mxu0 0.0
        %553 = vmatpush2.msra.mxu0 0.0
        %554 = vmatprep.subr.mxu0 0.0
        %555 = vmatpush2.msra.mxu0 0.0
        %556 = vmatprep.subr.mxu0 0.0
        %557 = vmatpush2.msra.mxu0 0.0
        %558 = vmatprep.subr.mxu0 0.0
        %559 = vmatpush2.msra.mxu0 0.0
        %560 = vmatprep.subr.mxu0 0.0
        %561 = vmatpush2.msra.mxu0 0.0
        %562 = vmatprep.subr.mxu0 0.0
        %563 = vmatpush2.msra.mxu0 0.0
        %564 = vmatprep.subr.mxu0 0.0
        %565 = vmatpush2.msra.mxu0 0.0
        %566 = vmatprep.subr.mxu0 0.0
        %567 = vmatpush2.msra.mxu0 0.0
        %568 = vmatprep.subr.mxu0 0.0
        %569 = vmatpush2.msra.mxu0 0.0
        %570 = vmatprep.subr.mxu0 0.0
        %571 = vmatpush2.msra.mxu0 0.0
        %572 = vmatprep.subr.mxu0 0.0
        %573 = vmatpush2.msra.mxu0 0.0
        %574 = vmatprep.subr.mxu0 0.0
        %575 = vmatpush2.msra.mxu0 0.0
        %576 = vmatprep.mubr.f32.mxu0 0.0
        %577 = vmatmul.mubr.f32.gmra.mxu0 %v507
        %v578 = vpop.f32.mrf.mxu0
        %v579 = vadd.f32 %v504, %v578
        %v580 = vpop.f32.mrf.mxu0
        %581 = vdwg.mxu0
        %vm582 = vcmask 7168
        %583 = vst.msk [vmem:[%s310] sm:$0xff] %vm582, %v579
        %p584 = scmp.lt.s32.totalorder %s24, 1
        %s585 = scalar_select %p584, %s24, 1
        %s586 = smul.addr %s585, 8
        %s587 = scalar_lea.vmem %s7, %s586
        // Predicated region
        $region57: #{_forward_impl.1} parent=47 // pred_check
          %p588 = pneg %p194
        $region58: #{_forward_impl.1} parent=47 // pred_check_branch
          %590 = sbr.rel (%p588) target = $region60
        $region59: #{_forward_impl.1} parent=47 // pred_region
          _
        $region60: #{_forward_impl.1} parent=47 // pred_fallthru
          _
      $region48: #{_forward_impl.1} parent=5 // pred_fallthru
        _
      %p591 = scmp.le.s32.totalorder 2, %s19
      // Predicated region
      $region61: #{_forward_impl.1} parent=5 // pred_check
        %p592 = pneg %p591
      $region62: #{_forward_impl.1} parent=5 // pred_check_branch
        %594 = sbr.rel (%p592) target = $region64
      $region63: #{_forward_impl.1} parent=5 // pred_region
        %s595 = ssub.s32 %s19, 2
        // Predicated region
        $region65: #{_forward_impl.1} parent=63 // pred_check
          %p596 = pneg %p200
        $region66: #{_forward_impl.1} parent=63 // pred_check_branch
          %598 = sbr.rel (%p596) target = $region68
        $region67: #{_forward_impl.1} parent=63 // pred_region
          %p599 = scmp.lt.s32.totalorder %s25, 1
          %s600 = scalar_select %p599, %s25, 1
          %s601 = smul.addr %s600, 8
          %s602 = scalar_lea.vmem %s7, %s601
        $region68: #{_forward_impl.1} parent=63 // pred_fallthru
          _
      $region64: #{_forward_impl.1} parent=5 // pred_fallthru
        _
    $region6: #{_forward_impl.1} parent=1 // loop_footer
      %s23 = sadd.s32 1, %s19
    $region7: #{_forward_impl.1} parent=1 // loop_footer_branch
      %18 = sbr.rel target = $region3
    $region8: #{_forward_impl.1} parent=1 // loop_exit
      _
    %603 = vsyncpa [#allocation4], 1
    %s604 = scalar_lea.sflag [#allocation4], 1
    %605 = vsyncpa %s604, 1
    %606 = vsyncpa [#allocation6], 1

</llo_original>
